<compile_context>
chip_gen: v7x
topology: tpu7x:2x2x1
jax: 0.10.0
libtpu: 0.0.40
codegen_flags: <defaults>
</compile_context>

<pallas_src>
from functools import partial

import numpy as np
import jax
import jax.numpy as jnp
from jax import lax
from jax.experimental import pallas as pl
from jax.experimental.pallas import tpu as pltpu


def _round_up(x, m):
    return (x + m - 1) // m * m


# ----------------------------------------------------------------------------
# Pallas kernel: one grid step = one (batch_tile, site_chunk) pair.
# ----------------------------------------------------------------------------
def mps_contract_kernel(x_ref, core_ref, out_ref, acc_ref, w_ref):
    # x_ref:    (S, BT)        raw pixels for this site chunk (batch on lanes)
    # core_ref: (S, BD, 2*BD)  packed, transposed per-site cores
    # out_ref:  (8, BT)        row 0 holds the final scalar per batch element
    # acc_ref:  (BD, BT)       VMEM scratch: carried bond vector v^T
    # w_ref:    (2*BD, BT)     VMEM scratch: staging for [e0*v ; e1*v]
    si = pl.program_id(1)
    bd = acc_ref.shape[0]
    n_sites = x_ref.shape[0]

    @pl.when(si == 0)
    def _():
        # Left boundary of the chain: one-hot bond vector e_0 for every column.
        acc_ref[...] = (
            lax.broadcasted_iota(jnp.int32, acc_ref.shape, 0) == 0
        ).astype(jnp.float32)

    def site_step(s, v):
        xrow = x_ref[pl.ds(s, 1), :]                              # (1, BT)
        e0 = jnp.where(xrow == -1.0, 0.01, 0.99)                  # (1, BT)
        w0 = e0 * v                                               # (BD, BT)
        # e1 = 1 - e0 exactly by construction, so e1*v = v - e0*v.
        w_ref[0:bd, :] = w0.astype(w_ref.dtype)
        w_ref[bd:, :] = (v - w0).astype(w_ref.dtype)
        # Fused per-site update: one MXU contraction with K = 2*BD.
        return jnp.dot(core_ref[s], w_ref[...],
                       preferred_element_type=jnp.float32)

    acc_ref[...] = lax.fori_loop(0, n_sites, site_step, acc_ref[...],
                                 unroll=True)

    @pl.when(si == pl.num_programs(1) - 1)
    def _():
        out_ref[...] = acc_ref[0:out_ref.shape[0], :]


# ----------------------------------------------------------------------------
# Parameter construction (mirrors MPS.__init__ shape logic).
# ----------------------------------------------------------------------------
def mps_core_shapes(input_dim, bond_dim):
    shapes = []
    for imx in range(input_dim // 2):
        if imx == 0:
            shapes.append((2, 2))                       # 'ir'
        else:
            l, r = 2 ** imx, 2 ** (imx + 1)
            if l <= bond_dim and r >= bond_dim:
                r = bond_dim
            elif l >= bond_dim and r >= bond_dim:
                l = r = bond_dim
            shapes.append((l, 2, r))                    # 'lir'
    for imx in range(input_dim // 2, input_dim):
        if imx == input_dim - 1:
            shapes.append((2, 2))                       # 'li'
        else:
            r = 2 ** (input_dim - 1 - imx)
            l = 2 ** (input_dim - imx)
            if l >= bond_dim and r >= bond_dim:
                l = r = bond_dim
            elif l >= bond_dim and r <= bond_dim:
                l = bond_dim
            shapes.append((l, 2, r))                    # 'lir'
    return shapes


def init_mps_tensors(key, input_dim, bond_dim, init_std):
    # TODO(synk): the reference __init__ overwrites selected core entries from a
    # text file (np.genfromtxt); no file I/O here, so cores keep the
    # deterministic 'random_zero' init (init_std * normal).
    tensors = []
    for shape in mps_core_shapes(input_dim, bond_dim):
        key, sub = jax.random.split(key)
        tensors.append(init_std * jax.random.normal(sub, shape, jnp.float32))
    return tensors


def build_packed_cores(tensors, core_dtype=jnp.float32,
                       vmem_budget_bytes=8 << 20, max_site_chunk=64):
    """Pack cores transposed as [n_pad, BD, 2*BD] so the per-site update is
        v'^T = C^T @ [e0*v^T ; e1*v^T].
    Bond dims are zero-padded to a multiple of 8 (fp32 sublane). The site count
    is padded to a multiple of the chosen site chunk with identity cores
    (identity for both features => v' = (e0+e1)*v = v, since e0+e1 == 1.0).
    Returns (packed cores, site_chunk)."""
    n = len(tensors)
    max_bond = max(max(np.asarray(t).shape) for t in tensors)
    bd = max(8, _round_up(max_bond, 8))

    # Size the per-grid-step site chunk from a VMEM budget (double-buffered
    # core DMA); keep it a multiple of 8 and bound the unrolled loop length.
    itemsize = np.dtype(core_dtype).itemsize
    per_site = 2 * bd * bd * itemsize
    s_cap = max(8, (vmem_budget_bytes // (2 * per_site)) // 8 * 8)
    site_chunk = int(min(_round_up(n, 8), s_cap, max_site_chunk))
    n_pad = _round_up(n, site_chunk)

    cores = np.zeros((n_pad, 2, bd, bd), np.float32)    # [site, feature, l, r]
    t0 = np.asarray(tensors[0], np.float32)             # [2, 2]    'ir'
    for f in range(2):
        cores[0, f, 0, : t0.shape[1]] = t0[f, :]
    for k in range(1, n - 1):
        t = np.asarray(tensors[k], np.float32)          # [l, 2, r] 'lir'
        for f in range(2):
            cores[k, f, : t.shape[0], : t.shape[2]] = t[:, f, :]
    tl = np.asarray(tensors[-1], np.float32)            # [l, 2]    'li'
    for f in range(2):
        cores[n - 1, f, : tl.shape[0], 0] = tl[:, f]
    for k in range(n, n_pad):                           # identity padding sites
        cores[k, 0] = np.eye(bd, dtype=np.float32)
        cores[k, 1] = np.eye(bd, dtype=np.float32)

    # Transpose per site: C_T[r, f*bd + l] = cores[f, l, r].
    cores_t = np.transpose(cores, (0, 3, 1, 2)).reshape(n_pad, bd, 2 * bd)
    return jnp.asarray(cores_t, core_dtype), site_chunk


# ----------------------------------------------------------------------------
# Wrapper around pallas_call.
# ----------------------------------------------------------------------------
@partial(jax.jit, static_argnames=("site_chunk",))
def mps_forward(x, cores_packed, *, site_chunk):
    """x: [batch, n_sites] raw pixels; cores_packed: [n_pad, BD, 2*BD]."""
    b, n = x.shape
    n_pad, bd, two_bd = cores_packed.shape
    assert n <= n_pad and n_pad % site_chunk == 0

    bt = 128                                   # lane-dense batch tile
    bpad = _round_up(b, bt)                    # b in (128, 256] -> 2 tiles (v7x)

    # Lane-dense pixel slab, sites on sublanes / batch on lanes. Padding sites
    # and padding batch columns use +1.0 (identity cores / sliced off below).
    x_t = jnp.full((n_pad, bpad), 1.0, jnp.float32)
    x_t = x_t.at[:n, :b].set(x.astype(jnp.float32).T)

    out = pl.pallas_call(
        mps_contract_kernel,
        out_shape=jax.ShapeDtypeStruct((8, bpad), jnp.float32),
        grid_spec=pltpu.PrefetchScalarGridSpec(
            num_scalar_prefetch=0,
            grid=(bpad // bt, n_pad // site_chunk),
            in_specs=[
                pl.BlockSpec((site_chunk, bt), lambda bi, si: (si, bi)),
                pl.BlockSpec((site_chunk, bd, two_bd), lambda bi, si: (si, 0, 0)),
            ],
            out_specs=pl.BlockSpec((8, bt), lambda bi, si: (0, bi)),
            scratch_shapes=[
                pltpu.VMEM((bd, bt), jnp.float32),       # carried bond vector
                pltpu.VMEM((2 * bd, bt), jnp.float32),   # [e0*v ; e1*v] staging
            ],
        ),
        compiler_params=pltpu.CompilerParams(
            dimension_semantics=("parallel", "arbitrary")),
    )(x_t, cores_packed)
    return out[0, :b][:, None]                 # matches torch output [batch, 1]


# ----------------------------------------------------------------------------
# Pure-JAX reference (mirrors LinearRegion.forward einsum/bmm chain).
# ----------------------------------------------------------------------------
def mps_reference(x, tensors):
    emb = jnp.stack(
        [jnp.where(x == -1.0, 0.01, 0.99), jnp.where(x == -1.0, 0.99, 0.01)],
        axis=-1,
    ).astype(jnp.float32)                                        # [B, N, 2]
    n = len(tensors)
    v = jnp.einsum("ir,bi->br", tensors[0], emb[:, 0])
    for k in range(1, n - 1):
        a = jnp.einsum("lir,bi->blr", tensors[k], emb[:, k])
        v = jnp.einsum("bl,blr->br", v, a)
    last = jnp.einsum("li,bi->bl", tensors[n - 1], emb[:, n - 1])
    return jnp.einsum("bl,bl->b", v, last)[:, None]


# ----------------------------------------------------------------------------
if __name__ == "__main__":
    key = jax.random.PRNGKey(0)
    key, k_params, k_data = jax.random.split(key, 3)

    # --- small config matching the module (init_std raised: the default 1e-9
    #     relies on file-based overrides we cannot read) ---
    input_dim = 8
    bond_dim = 4
    init_std = 0.5

    tensors = init_mps_tensors(k_params, input_dim, bond_dim, init_std)
    cores_f32, chunk_f32 = build_packed_cores(tensors)          # BD=8, S=8

    def rand_pm1(k, shape):
        return jnp.where(jax.random.bernoulli(k, 0.5, shape), 1.0, -1.0
                         ).astype(jnp.float32)

    x = rand_pm1(k_data, (2, input_dim))
    out = mps_forward(x, cores_f32, site_chunk=chunk_f32)
    jax.block_until_ready(out)
    ref = mps_reference(x, tensors)
    assert out.shape == (2, 1), out.shape
    assert jnp.allclose(out, ref, rtol=1e-4, atol=1e-6), (out, ref)

    # Larger batch (single 128-lane batch tile).
    key, k2 = jax.random.split(key)
    x2 = rand_pm1(k2, (16, input_dim))
    out2 = mps_forward(x2, cores_f32, site_chunk=chunk_f32)
    jax.block_until_ready(out2)
    ref2 = mps_reference(x2, tensors)
    assert out2.shape == (16, 1), out2.shape
    assert jnp.allclose(out2, ref2, rtol=1e-4, atol=1e-6), (out2, ref2)

    # bf16-stored cores (halved HBM core stream), f32 accumulation.
    cores_bf16, chunk_bf16 = build_packed_cores(tensors, core_dtype=jnp.bfloat16)
    out_bf = mps_forward(x2, cores_bf16, site_chunk=chunk_bf16)
    jax.block_until_ready(out_bf)
    tensors_bf = [t.astype(jnp.bfloat16).astype(jnp.float32) for t in tensors]
    ref_bf = mps_reference(x2, tensors_bf)
    assert jnp.allclose(out_bf, ref_bf, rtol=1e-3, atol=1e-5), (out_bf, ref_bf)

    # Longer chain with a deliberately tiny VMEM budget: multiple site chunks
    # per batch tile, identity-core site padding, and 2 batch tiles (so the
    # "parallel" batch axis can shard across both v7x TensorCores).
    key, k3p, k3d = jax.random.split(key, 3)
    tensors3 = init_mps_tensors(k3p, 20, 6, 0.4)
    cores3, chunk3 = build_packed_cores(tensors3, vmem_budget_bytes=8 * 1024)
    x3 = rand_pm1(k3d, (200, 20))
    out3 = mps_forward(x3, cores3, site_chunk=chunk3)
    jax.block_until_ready(out3)
    ref3 = mps_reference(x3, tensors3)
    assert out3.shape == (200, 1), out3.shape
    assert jnp.allclose(out3, ref3, rtol=2e-4, atol=1e-3), (out3, ref3)

    print("KERNEL_OK")
</pallas_src>

<mosaic_0001>
module attributes {stable_mosaic.version = 11 : i64} {
  func.func @mps_contract_kernel(%arg0: i32, %arg1: i32, %arg2: memref<8x128xf32, #tpu.memory_space<vmem>>, %arg3: memref<8x8x16xf32, #tpu.memory_space<vmem>>, %arg4: memref<8x128xf32, #tpu.memory_space<vmem>>, %arg5: memref<8x128xf32, #tpu.memory_space<vmem>>, %arg6: memref<16x128xf32, #tpu.memory_space<vmem>>) attributes {dimension_semantics = [#tpu.dimension_semantics<parallel>, #tpu.dimension_semantics<arbitrary>], iteration_bounds = array<i64: 1, 1>, scalar_prefetch = 0 : i64, scratch_operands = 2 : i64, tpu.core_type = #tpu.core_type<tc>, window_params = [{transform_indices = @transform_0, window_bounds = array<i64: 8, 128>}, {transform_indices = @transform_1, window_bounds = array<i64: 8, 8, 16>}, {transform_indices = @transform_2, window_bounds = array<i64: 8, 128>}]} {
    %c0_i32 = arith.constant 0 : i32
    %0 = arith.cmpi eq, %arg1, %c0_i32 : i32
    %1 = arith.extui %0 : i1 to i32
    %c0_i32_0 = arith.constant 0 : i32
    %2 = arith.cmpi ne, %1, %c0_i32_0 : i32
    scf.if %2 {
      %144 = tpu.iota {dimensions = array<i32: 0>} : vector<8x128xi32>
      %c0_i32_109 = arith.constant 0 : i32
      %145 = vector.broadcast %c0_i32_109 : i32 to vector<8x128xi32>
      %146 = arith.cmpi eq, %144, %145 : vector<8x128xi32>
      %147 = arith.extui %146 : vector<8x128xi1> to vector<8x128xi32>
      %148 = arith.sitofp %147 : vector<8x128xi32> to vector<8x128xf32>
      %c0_110 = arith.constant 0 : index
      %c0_111 = arith.constant 0 : index
      %149 = vector.load %arg5[%c0_110, %c0_111] : memref<8x128xf32, #tpu.memory_space<vmem>>, vector<8x128xf32>
      tpu.vector_store %arg5[%c0_110, %c0_111], %148 {strides = array<i32>} : memref<8x128xf32, #tpu.memory_space<vmem>>, vector<8x128xf32>,
    } else {
    }
    %c0 = arith.constant 0 : index
    %c0_1 = arith.constant 0 : index
    %3 = vector.load %arg5[%c0, %c0_1] : memref<8x128xf32, #tpu.memory_space<vmem>>, vector<8x128xf32>
    %c0_i32_2 = arith.constant 0 : i32
    %4 = arith.index_cast %c0_i32_2 : i32 to index
    %c0_3 = arith.constant 0 : index
    %5 = vector.load %arg2[%4, %c0_3] : memref<8x128xf32, #tpu.memory_space<vmem>>, vector<1x128xf32>
    %cst = arith.constant -1.000000e+00 : f32
    %6 = vector.broadcast %cst : f32 to vector<1x128xf32>
    %7 = arith.cmpf oeq, %5, %6 : vector<1x128xf32>
    %cst_4 = arith.constant 0.00999999977 : f32
    %cst_5 = arith.constant 9.900000e-01 : f32
    %8 = vector.broadcast %cst_4 : f32 to vector<1x128xf32>
    %9 = vector.broadcast %cst_5 : f32 to vector<1x128xf32>
    %10 = arith.select %7, %8, %9 : vector<1x128xi1>, vector<1x128xf32>
    %11 = vector.broadcast %10 : vector<1x128xf32> to vector<8x128xf32>
    %12 = arith.mulf %11, %3 : vector<8x128xf32>
    %c0_6 = arith.constant 0 : index
    %c0_7 = arith.constant 0 : index
    %13 = vector.load %arg6[%c0_6, %c0_7] : memref<16x128xf32, #tpu.memory_space<vmem>>, vector<8x128xf32>
    tpu.vector_store %arg6[%c0_6, %c0_7], %12 {strides = array<i32>} : memref<16x128xf32, #tpu.memory_space<vmem>>, vector<8x128xf32>,
    %14 = arith.subf %3, %12 : vector<8x128xf32>
    %c8 = arith.constant 8 : index
    %c0_8 = arith.constant 0 : index
    %15 = vector.load %arg6[%c8, %c0_8] : memref<16x128xf32, #tpu.memory_space<vmem>>, vector<8x128xf32>
    tpu.vector_store %arg6[%c8, %c0_8], %14 {strides = array<i32>} : memref<16x128xf32, #tpu.memory_space<vmem>>, vector<8x128xf32>,
    %16 = arith.index_cast %c0_i32_2 : i32 to index
    %c0_9 = arith.constant 0 : index
    %c0_10 = arith.constant 0 : index
    %17 = vector.load %arg3[%16, %c0_9, %c0_10] : memref<8x8x16xf32, #tpu.memory_space<vmem>>, vector<1x8x16xf32>
    %18 = vector.shape_cast %17 : vector<1x8x16xf32> to vector<8x16xf32>
    %c0_11 = arith.constant 0 : index
    %c0_12 = arith.constant 0 : index
    %19 = vector.load %arg6[%c0_11, %c0_12] : memref<16x128xf32, #tpu.memory_space<vmem>>, vector<16x128xf32>
    %cst_13 = arith.constant dense<0.000000e+00> : vector<8x128xf32>
    %20 = tpu.matmul %18, %19, %cst_13 {dimension_numbers = #tpu.dot_dimension_numbers<[1], [0], [0], [1], [0, 0, 1, 1], [], []>} : vector<8x16xf32>, vector<16x128xf32>, vector<8x128xf32> -> vector<8x128xf32>
    %c1_i32 = arith.constant 1 : i32
    %21 = arith.index_cast %c1_i32 : i32 to index
    %c0_14 = arith.constant 0 : index
    %22 = vector.load %arg2[%21, %c0_14] : memref<8x128xf32, #tpu.memory_space<vmem>>, vector<1x128xf32>
    %cst_15 = arith.constant -1.000000e+00 : f32
    %23 = vector.broadcast %cst_15 : f32 to vector<1x128xf32>
    %24 = arith.cmpf oeq, %22, %23 : vector<1x128xf32>
    %cst_16 = arith.constant 0.00999999977 : f32
    %cst_17 = arith.constant 9.900000e-01 : f32
    %25 = vector.broadcast %cst_16 : f32 to vector<1x128xf32>
    %26 = vector.broadcast %cst_17 : f32 to vector<1x128xf32>
    %27 = arith.select %24, %25, %26 : vector<1x128xi1>, vector<1x128xf32>
    %28 = vector.broadcast %27 : vector<1x128xf32> to vector<8x128xf32>
    %29 = arith.mulf %28, %20 : vector<8x128xf32>
    %c0_18 = arith.constant 0 : index
    %c0_19 = arith.constant 0 : index
    %30 = vector.load %arg6[%c0_18, %c0_19] : memref<16x128xf32, #tpu.memory_space<vmem>>, vector<8x128xf32>
    tpu.vector_store %arg6[%c0_18, %c0_19], %29 {strides = array<i32>} : memref<16x128xf32, #tpu.memory_space<vmem>>, vector<8x128xf32>,
    %31 = arith.subf %20, %29 : vector<8x128xf32>
    %c8_20 = arith.constant 8 : index
    %c0_21 = arith.constant 0 : index
    %32 = vector.load %arg6[%c8_20, %c0_21] : memref<16x128xf32, #tpu.memory_space<vmem>>, vector<8x128xf32>
    tpu.vector_store %arg6[%c8_20, %c0_21], %31 {strides = array<i32>} : memref<16x128xf32, #tpu.memory_space<vmem>>, vector<8x128xf32>,
    %33 = arith.index_cast %c1_i32 : i32 to index
    %c0_22 = arith.constant 0 : index
    %c0_23 = arith.constant 0 : index
    %34 = vector.load %arg3[%33, %c0_22, %c0_23] : memref<8x8x16xf32, #tpu.memory_space<vmem>>, vector<1x8x16xf32>
    %35 = vector.shape_cast %34 : vector<1x8x16xf32> to vector<8x16xf32>
    %c0_24 = arith.constant 0 : index
    %c0_25 = arith.constant 0 : index
    %36 = vector.load %arg6[%c0_24, %c0_25] : memref<16x128xf32, #tpu.memory_space<vmem>>, vector<16x128xf32>
    %cst_26 = arith.constant dense<0.000000e+00> : vector<8x128xf32>
    %37 = tpu.matmul %35, %36, %cst_26 {dimension_numbers = #tpu.dot_dimension_numbers<[1], [0], [0], [1], [0, 0, 1, 1], [], []>} : vector<8x16xf32>, vector<16x128xf32>, vector<8x128xf32> -> vector<8x128xf32>
    %c2_i32 = arith.constant 2 : i32
    %38 = arith.index_cast %c2_i32 : i32 to index
    %c0_27 = arith.constant 0 : index
    %39 = vector.load %arg2[%38, %c0_27] : memref<8x128xf32, #tpu.memory_space<vmem>>, vector<1x128xf32>
    %cst_28 = arith.constant -1.000000e+00 : f32
    %40 = vector.broadcast %cst_28 : f32 to vector<1x128xf32>
    %41 = arith.cmpf oeq, %39, %40 : vector<1x128xf32>
    %cst_29 = arith.constant 0.00999999977 : f32
    %cst_30 = arith.constant 9.900000e-01 : f32
    %42 = vector.broadcast %cst_29 : f32 to vector<1x128xf32>
    %43 = vector.broadcast %cst_30 : f32 to vector<1x128xf32>
    %44 = arith.select %41, %42, %43 : vector<1x128xi1>, vector<1x128xf32>
    %45 = vector.broadcast %44 : vector<1x128xf32> to vector<8x128xf32>
    %46 = arith.mulf %45, %37 : vector<8x128xf32>
    %c0_31 = arith.constant 0 : index
    %c0_32 = arith.constant 0 : index
    %47 = vector.load %arg6[%c0_31, %c0_32] : memref<16x128xf32, #tpu.memory_space<vmem>>, vector<8x128xf32>
    tpu.vector_store %arg6[%c0_31, %c0_32], %46 {strides = array<i32>} : memref<16x128xf32, #tpu.memory_space<vmem>>, vector<8x128xf32>,
    %48 = arith.subf %37, %46 : vector<8x128xf32>
    %c8_33 = arith.constant 8 : index
    %c0_34 = arith.constant 0 : index
    %49 = vector.load %arg6[%c8_33, %c0_34] : memref<16x128xf32, #tpu.memory_space<vmem>>, vector<8x128xf32>
    tpu.vector_store %arg6[%c8_33, %c0_34], %48 {strides = array<i32>} : memref<16x128xf32, #tpu.memory_space<vmem>>, vector<8x128xf32>,
    %50 = arith.index_cast %c2_i32 : i32 to index
    %c0_35 = arith.constant 0 : index
    %c0_36 = arith.constant 0 : index
    %51 = vector.load %arg3[%50, %c0_35, %c0_36] : memref<8x8x16xf32, #tpu.memory_space<vmem>>, vector<1x8x16xf32>
    %52 = vector.shape_cast %51 : vector<1x8x16xf32> to vector<8x16xf32>
    %c0_37 = arith.constant 0 : index
    %c0_38 = arith.constant 0 : index
    %53 = vector.load %arg6[%c0_37, %c0_38] : memref<16x128xf32, #tpu.memory_space<vmem>>, vector<16x128xf32>
    %cst_39 = arith.constant dense<0.000000e+00> : vector<8x128xf32>
    %54 = tpu.matmul %52, %53, %cst_39 {dimension_numbers = #tpu.dot_dimension_numbers<[1], [0], [0], [1], [0, 0, 1, 1], [], []>} : vector<8x16xf32>, vector<16x128xf32>, vector<8x128xf32> -> vector<8x128xf32>
    %c3_i32 = arith.constant 3 : i32
    %55 = arith.index_cast %c3_i32 : i32 to index
    %c0_40 = arith.constant 0 : index
    %56 = vector.load %arg2[%55, %c0_40] : memref<8x128xf32, #tpu.memory_space<vmem>>, vector<1x128xf32>
    %cst_41 = arith.constant -1.000000e+00 : f32
    %57 = vector.broadcast %cst_41 : f32 to vector<1x128xf32>
    %58 = arith.cmpf oeq, %56, %57 : vector<1x128xf32>
    %cst_42 = arith.constant 0.00999999977 : f32
    %cst_43 = arith.constant 9.900000e-01 : f32
    %59 = vector.broadcast %cst_42 : f32 to vector<1x128xf32>
    %60 = vector.broadcast %cst_43 : f32 to vector<1x128xf32>
    %61 = arith.select %58, %59, %60 : vector<1x128xi1>, vector<1x128xf32>
    %62 = vector.broadcast %61 : vector<1x128xf32> to vector<8x128xf32>
    %63 = arith.mulf %62, %54 : vector<8x128xf32>
    %c0_44 = arith.constant 0 : index
    %c0_45 = arith.constant 0 : index
    %64 = vector.load %arg6[%c0_44, %c0_45] : memref<16x128xf32, #tpu.memory_space<vmem>>, vector<8x128xf32>
    tpu.vector_store %arg6[%c0_44, %c0_45], %63 {strides = array<i32>} : memref<16x128xf32, #tpu.memory_space<vmem>>, vector<8x128xf32>,
    %65 = arith.subf %54, %63 : vector<8x128xf32>
    %c8_46 = arith.constant 8 : index
    %c0_47 = arith.constant 0 : index
    %66 = vector.load %arg6[%c8_46, %c0_47] : memref<16x128xf32, #tpu.memory_space<vmem>>, vector<8x128xf32>
    tpu.vector_store %arg6[%c8_46, %c0_47], %65 {strides = array<i32>} : memref<16x128xf32, #tpu.memory_space<vmem>>, vector<8x128xf32>,
    %67 = arith.index_cast %c3_i32 : i32 to index
    %c0_48 = arith.constant 0 : index
    %c0_49 = arith.constant 0 : index
    %68 = vector.load %arg3[%67, %c0_48, %c0_49] : memref<8x8x16xf32, #tpu.memory_space<vmem>>, vector<1x8x16xf32>
    %69 = vector.shape_cast %68 : vector<1x8x16xf32> to vector<8x16xf32>
    %c0_50 = arith.constant 0 : index
    %c0_51 = arith.constant 0 : index
    %70 = vector.load %arg6[%c0_50, %c0_51] : memref<16x128xf32, #tpu.memory_space<vmem>>, vector<16x128xf32>
    %cst_52 = arith.constant dense<0.000000e+00> : vector<8x128xf32>
    %71 = tpu.matmul %69, %70, %cst_52 {dimension_numbers = #tpu.dot_dimension_numbers<[1], [0], [0], [1], [0, 0, 1, 1], [], []>} : vector<8x16xf32>, vector<16x128xf32>, vector<8x128xf32> -> vector<8x128xf32>
    %c4_i32 = arith.constant 4 : i32
    %72 = arith.index_cast %c4_i32 : i32 to index
    %c0_53 = arith.constant 0 : index
    %73 = vector.load %arg2[%72, %c0_53] : memref<8x128xf32, #tpu.memory_space<vmem>>, vector<1x128xf32>
    %cst_54 = arith.constant -1.000000e+00 : f32
    %74 = vector.broadcast %cst_54 : f32 to vector<1x128xf32>
    %75 = arith.cmpf oeq, %73, %74 : vector<1x128xf32>
    %cst_55 = arith.constant 0.00999999977 : f32
    %cst_56 = arith.constant 9.900000e-01 : f32
    %76 = vector.broadcast %cst_55 : f32 to vector<1x128xf32>
    %77 = vector.broadcast %cst_56 : f32 to vector<1x128xf32>
    %78 = arith.select %75, %76, %77 : vector<1x128xi1>, vector<1x128xf32>
    %79 = vector.broadcast %78 : vector<1x128xf32> to vector<8x128xf32>
    %80 = arith.mulf %79, %71 : vector<8x128xf32>
    %c0_57 = arith.constant 0 : index
    %c0_58 = arith.constant 0 : index
    %81 = vector.load %arg6[%c0_57, %c0_58] : memref<16x128xf32, #tpu.memory_space<vmem>>, vector<8x128xf32>
    tpu.vector_store %arg6[%c0_57, %c0_58], %80 {strides = array<i32>} : memref<16x128xf32, #tpu.memory_space<vmem>>, vector<8x128xf32>,
    %82 = arith.subf %71, %80 : vector<8x128xf32>
    %c8_59 = arith.constant 8 : index
    %c0_60 = arith.constant 0 : index
    %83 = vector.load %arg6[%c8_59, %c0_60] : memref<16x128xf32, #tpu.memory_space<vmem>>, vector<8x128xf32>
    tpu.vector_store %arg6[%c8_59, %c0_60], %82 {strides = array<i32>} : memref<16x128xf32, #tpu.memory_space<vmem>>, vector<8x128xf32>,
    %84 = arith.index_cast %c4_i32 : i32 to index
    %c0_61 = arith.constant 0 : index
    %c0_62 = arith.constant 0 : index
    %85 = vector.load %arg3[%84, %c0_61, %c0_62] : memref<8x8x16xf32, #tpu.memory_space<vmem>>, vector<1x8x16xf32>
    %86 = vector.shape_cast %85 : vector<1x8x16xf32> to vector<8x16xf32>
    %c0_63 = arith.constant 0 : index
    %c0_64 = arith.constant 0 : index
    %87 = vector.load %arg6[%c0_63, %c0_64] : memref<16x128xf32, #tpu.memory_space<vmem>>, vector<16x128xf32>
    %cst_65 = arith.constant dense<0.000000e+00> : vector<8x128xf32>
    %88 = tpu.matmul %86, %87, %cst_65 {dimension_numbers = #tpu.dot_dimension_numbers<[1], [0], [0], [1], [0, 0, 1, 1], [], []>} : vector<8x16xf32>, vector<16x128xf32>, vector<8x128xf32> -> vector<8x128xf32>
    %c5_i32 = arith.constant 5 : i32
    %89 = arith.index_cast %c5_i32 : i32 to index
    %c0_66 = arith.constant 0 : index
    %90 = vector.load %arg2[%89, %c0_66] : memref<8x128xf32, #tpu.memory_space<vmem>>, vector<1x128xf32>
    %cst_67 = arith.constant -1.000000e+00 : f32
    %91 = vector.broadcast %cst_67 : f32 to vector<1x128xf32>
    %92 = arith.cmpf oeq, %90, %91 : vector<1x128xf32>
    %cst_68 = arith.constant 0.00999999977 : f32
    %cst_69 = arith.constant 9.900000e-01 : f32
    %93 = vector.broadcast %cst_68 : f32 to vector<1x128xf32>
    %94 = vector.broadcast %cst_69 : f32 to vector<1x128xf32>
    %95 = arith.select %92, %93, %94 : vector<1x128xi1>, vector<1x128xf32>
    %96 = vector.broadcast %95 : vector<1x128xf32> to vector<8x128xf32>
    %97 = arith.mulf %96, %88 : vector<8x128xf32>
    %c0_70 = arith.constant 0 : index
    %c0_71 = arith.constant 0 : index
    %98 = vector.load %arg6[%c0_70, %c0_71] : memref<16x128xf32, #tpu.memory_space<vmem>>, vector<8x128xf32>
    tpu.vector_store %arg6[%c0_70, %c0_71], %97 {strides = array<i32>} : memref<16x128xf32, #tpu.memory_space<vmem>>, vector<8x128xf32>,
    %99 = arith.subf %88, %97 : vector<8x128xf32>
    %c8_72 = arith.constant 8 : index
    %c0_73 = arith.constant 0 : index
    %100 = vector.load %arg6[%c8_72, %c0_73] : memref<16x128xf32, #tpu.memory_space<vmem>>, vector<8x128xf32>
    tpu.vector_store %arg6[%c8_72, %c0_73], %99 {strides = array<i32>} : memref<16x128xf32, #tpu.memory_space<vmem>>, vector<8x128xf32>,
    %101 = arith.index_cast %c5_i32 : i32 to index
    %c0_74 = arith.constant 0 : index
    %c0_75 = arith.constant 0 : index
    %102 = vector.load %arg3[%101, %c0_74, %c0_75] : memref<8x8x16xf32, #tpu.memory_space<vmem>>, vector<1x8x16xf32>
    %103 = vector.shape_cast %102 : vector<1x8x16xf32> to vector<8x16xf32>
    %c0_76 = arith.constant 0 : index
    %c0_77 = arith.constant 0 : index
    %104 = vector.load %arg6[%c0_76, %c0_77] : memref<16x128xf32, #tpu.memory_space<vmem>>, vector<16x128xf32>
    %cst_78 = arith.constant dense<0.000000e+00> : vector<8x128xf32>
    %105 = tpu.matmul %103, %104, %cst_78 {dimension_numbers = #tpu.dot_dimension_numbers<[1], [0], [0], [1], [0, 0, 1, 1], [], []>} : vector<8x16xf32>, vector<16x128xf32>, vector<8x128xf32> -> vector<8x128xf32>
    %c6_i32 = arith.constant 6 : i32
    %106 = arith.index_cast %c6_i32 : i32 to index
    %c0_79 = arith.constant 0 : index
    %107 = vector.load %arg2[%106, %c0_79] : memref<8x128xf32, #tpu.memory_space<vmem>>, vector<1x128xf32>
    %cst_80 = arith.constant -1.000000e+00 : f32
    %108 = vector.broadcast %cst_80 : f32 to vector<1x128xf32>
    %109 = arith.cmpf oeq, %107, %108 : vector<1x128xf32>
    %cst_81 = arith.constant 0.00999999977 : f32
    %cst_82 = arith.constant 9.900000e-01 : f32
    %110 = vector.broadcast %cst_81 : f32 to vector<1x128xf32>
    %111 = vector.broadcast %cst_82 : f32 to vector<1x128xf32>
    %112 = arith.select %109, %110, %111 : vector<1x128xi1>, vector<1x128xf32>
    %113 = vector.broadcast %112 : vector<1x128xf32> to vector<8x128xf32>
    %114 = arith.mulf %113, %105 : vector<8x128xf32>
    %c0_83 = arith.constant 0 : index
    %c0_84 = arith.constant 0 : index
    %115 = vector.load %arg6[%c0_83, %c0_84] : memref<16x128xf32, #tpu.memory_space<vmem>>, vector<8x128xf32>
    tpu.vector_store %arg6[%c0_83, %c0_84], %114 {strides = array<i32>} : memref<16x128xf32, #tpu.memory_space<vmem>>, vector<8x128xf32>,
    %116 = arith.subf %105, %114 : vector<8x128xf32>
    %c8_85 = arith.constant 8 : index
    %c0_86 = arith.constant 0 : index
    %117 = vector.load %arg6[%c8_85, %c0_86] : memref<16x128xf32, #tpu.memory_space<vmem>>, vector<8x128xf32>
    tpu.vector_store %arg6[%c8_85, %c0_86], %116 {strides = array<i32>} : memref<16x128xf32, #tpu.memory_space<vmem>>, vector<8x128xf32>,
    %118 = arith.index_cast %c6_i32 : i32 to index
    %c0_87 = arith.constant 0 : index
    %c0_88 = arith.constant 0 : index
    %119 = vector.load %arg3[%118, %c0_87, %c0_88] : memref<8x8x16xf32, #tpu.memory_space<vmem>>, vector<1x8x16xf32>
    %120 = vector.shape_cast %119 : vector<1x8x16xf32> to vector<8x16xf32>
    %c0_89 = arith.constant 0 : index
    %c0_90 = arith.constant 0 : index
    %121 = vector.load %arg6[%c0_89, %c0_90] : memref<16x128xf32, #tpu.memory_space<vmem>>, vector<16x128xf32>
    %cst_91 = arith.constant dense<0.000000e+00> : vector<8x128xf32>
    %122 = tpu.matmul %120, %121, %cst_91 {dimension_numbers = #tpu.dot_dimension_numbers<[1], [0], [0], [1], [0, 0, 1, 1], [], []>} : vector<8x16xf32>, vector<16x128xf32>, vector<8x128xf32> -> vector<8x128xf32>
    %c7_i32 = arith.constant 7 : i32
    %123 = arith.index_cast %c7_i32 : i32 to index
    %c0_92 = arith.constant 0 : index
    %124 = vector.load %arg2[%123, %c0_92] : memref<8x128xf32, #tpu.memory_space<vmem>>, vector<1x128xf32>
    %cst_93 = arith.constant -1.000000e+00 : f32
    %125 = vector.broadcast %cst_93 : f32 to vector<1x128xf32>
    %126 = arith.cmpf oeq, %124, %125 : vector<1x128xf32>
    %cst_94 = arith.constant 0.00999999977 : f32
    %cst_95 = arith.constant 9.900000e-01 : f32
    %127 = vector.broadcast %cst_94 : f32 to vector<1x128xf32>
    %128 = vector.broadcast %cst_95 : f32 to vector<1x128xf32>
    %129 = arith.select %126, %127, %128 : vector<1x128xi1>, vector<1x128xf32>
    %130 = vector.broadcast %129 : vector<1x128xf32> to vector<8x128xf32>
    %131 = arith.mulf %130, %122 : vector<8x128xf32>
    %c0_96 = arith.constant 0 : index
    %c0_97 = arith.constant 0 : index
    %132 = vector.load %arg6[%c0_96, %c0_97] : memref<16x128xf32, #tpu.memory_space<vmem>>, vector<8x128xf32>
    tpu.vector_store %arg6[%c0_96, %c0_97], %131 {strides = array<i32>} : memref<16x128xf32, #tpu.memory_space<vmem>>, vector<8x128xf32>,
    %133 = arith.subf %122, %131 : vector<8x128xf32>
    %c8_98 = arith.constant 8 : index
    %c0_99 = arith.constant 0 : index
    %134 = vector.load %arg6[%c8_98, %c0_99] : memref<16x128xf32, #tpu.memory_space<vmem>>, vector<8x128xf32>
    tpu.vector_store %arg6[%c8_98, %c0_99], %133 {strides = array<i32>} : memref<16x128xf32, #tpu.memory_space<vmem>>, vector<8x128xf32>,
    %135 = arith.index_cast %c7_i32 : i32 to index
    %c0_100 = arith.constant 0 : index
    %c0_101 = arith.constant 0 : index
    %136 = vector.load %arg3[%135, %c0_100, %c0_101] : memref<8x8x16xf32, #tpu.memory_space<vmem>>, vector<1x8x16xf32>
    %137 = vector.shape_cast %136 : vector<1x8x16xf32> to vector<8x16xf32>
    %c0_102 = arith.constant 0 : index
    %c0_103 = arith.constant 0 : index
    %138 = vector.load %arg6[%c0_102, %c0_103] : memref<16x128xf32, #tpu.memory_space<vmem>>, vector<16x128xf32>
    %cst_104 = arith.constant dense<0.000000e+00> : vector<8x128xf32>
    %139 = tpu.matmul %137, %138, %cst_104 {dimension_numbers = #tpu.dot_dimension_numbers<[1], [0], [0], [1], [0, 0, 1, 1], [], []>} : vector<8x16xf32>, vector<16x128xf32>, vector<8x128xf32> -> vector<8x128xf32>
    %c8_i32 = arith.constant 8 : i32
    %c0_105 = arith.constant 0 : index
    %c0_106 = arith.constant 0 : index
    %140 = vector.load %arg5[%c0_105, %c0_106] : memref<8x128xf32, #tpu.memory_space<vmem>>, vector<8x128xf32>
    tpu.vector_store %arg5[%c0_105, %c0_106], %139 {strides = array<i32>} : memref<8x128xf32, #tpu.memory_space<vmem>>, vector<8x128xf32>,
    %c0_i32_107 = arith.constant 0 : i32
    %141 = arith.cmpi eq, %arg1, %c0_i32_107 : i32
    %142 = arith.extui %141 : i1 to i32
    %c0_i32_108 = arith.constant 0 : i32
    %143 = arith.cmpi ne, %142, %c0_i32_108 : i32
    scf.if %143 {
      %c0_109 = arith.constant 0 : index
      %c0_110 = arith.constant 0 : index
      %144 = vector.load %arg5[%c0_109, %c0_110] : memref<8x128xf32, #tpu.memory_space<vmem>>, vector<8x128xf32>
      %c0_111 = arith.constant 0 : index
      %c0_112 = arith.constant 0 : index
      %145 = vector.load %arg4[%c0_111, %c0_112] : memref<8x128xf32, #tpu.memory_space<vmem>>, vector<8x128xf32>
      tpu.vector_store %arg4[%c0_111, %c0_112], %144 {strides = array<i32>} : memref<8x128xf32, #tpu.memory_space<vmem>>, vector<8x128xf32>,
    } else {
    }
    return
  }
  func.func @transform_0(%arg0: i32, %arg1: i32) -> (i32, i32) {
    %c0_i32 = arith.constant 0 : i32
    return %arg1, %arg0 : i32, i32
  }
  func.func @transform_1(%arg0: i32, %arg1: i32) -> (i32, i32, i32) {
    %c0_i32 = arith.constant 0 : i32
    %c0_i32_0 = arith.constant 0 : i32
    %c0_i32_1 = arith.constant 0 : i32
    return %arg1, %c0_i32, %c0_i32_0 : i32, i32, i32
  }
  func.func @transform_2(%arg0: i32, %arg1: i32) -> (i32, i32) {
    %c0_i32 = arith.constant 0 : i32
    %c0_i32_0 = arith.constant 0 : i32
    return %c0_i32, %arg0 : i32, i32
  }
}

</mosaic_0001>

<llo_original>
// kernel: mps_forward.1
$region0: #{mps_forward.1}
  #allocation0 [shape = 'u32[]', space=smem, size = 0x4, offset = 0x4, fixed_abs, tag = 'smem constant byte address 0x4 - core index']
  #allocation1 [shape = 'u32[144,128]{1,0:T(1,128)}', space=vmem, size = 0x12000, scoped, tag = 'internal scratch']
  #allocation2 [shape = 'f32[8,128]{1,0:T(8,128)}', space=vmem, size = 0x1000, scoped, tag = 'scratch operand']
  #allocation3 [shape = 'f32[16,128]{1,0:T(8,128)}', space=vmem, size = 0x2000, scoped, tag = 'scratch operand']
  %s0 = inlined_call_operand.vmem [shape: f32[8,128], index: 0, kind: input, shape index: {}]
  %s1 = inlined_call_operand.hbm [shape: f32[8,8,16], index: 1, kind: input, shape index: {}]
  %s2 = inlined_call_operand.vmem [shape: f32[8,128], index: 2, kind: output, shape index: {}]
  %s3 = sld [smem:[#allocation0]]
  $region30: #{mps_forward.1} parent=0
    _
  %s5 = ssub.s32 1, %s3
  %s6 = scalar_select 0, %s5, %s3
  $region1: #{mps_forward.1} parent=0
    #allocation4 [shape = 'u8[32768]{0}', space=vmem, size = 0x8000, scoped, tag = 'input window, operand 1, single buffered']
    #allocation5 [shape = 's32[1]{0}', space=sflag, size = 0x4, scoped, tag = 'scoped memory for mps_forward.1']
    %7 = vsyncpa [#allocation5], 0
    // Predicated region
    $region2: #{mps_forward.1} parent=1 // pred_check
      _
    $region3: #{mps_forward.1} parent=1 // pred_check_branch
      %9 = sbr.rel (0) target = $region5
    $region4: #{mps_forward.1} parent=1 // pred_region
      _
    $region5: #{mps_forward.1} parent=1 // pred_fallthru
      _
    // Predicated region
    $region6: #{mps_forward.1} parent=1 // pred_check
      _
    $region7: #{mps_forward.1} parent=1 // pred_check_branch
      %11 = sbr.rel (0) target = $region9
    $region8: #{mps_forward.1} parent=1 // pred_region
      %s13 = ssub.s32 1024, 1024
      %14 = vsyncadd [#allocation5], %s13
      %s15 = sshll.u32 [#allocation4], 4
      %s16 = int_to_ptr.vmem [resolvable:$true] %s15
      %21 = dma.hbm_to_vmem [thread:$0]  %s1, 1024, %s16, [#allocation5], 128, 128, 8
    $region9: #{mps_forward.1} parent=1 // pred_fallthru
      _
    // Predicated region
    $region10: #{mps_forward.1} parent=1 // pred_check
      _
    $region11: #{mps_forward.1} parent=1 // pred_check_branch
      %23 = sbr.rel (0) target = $region13
    $region12: #{mps_forward.1} parent=1 // pred_region
      %24 = dma.done [#allocation5], 1024
    $region13: #{mps_forward.1} parent=1 // pred_fallthru
      _
    %p25 = scmp.eq.s32.totalorder 0, 0
    // Predicated region
    $region14: #{mps_forward.1} parent=1 // pred_check
      %p26 = pneg %p25
    $region15: #{mps_forward.1} parent=1 // pred_check_branch
      %28 = sbr.rel (%p26) target = $region17
    $region16: #{mps_forward.1} parent=1 // pred_region
      %v29 = vlaneseq
      %v30 = vshrl.u32 %v29, 7
      %vm31 = vcmp.eq.s32.totalorder %v30, 0
      %v32 = vsel %vm31, 1, 0
      %v33 = vcvt.s32.f32 %v32
      %34 = vst [vmem:[#allocation2] sm:$0xff] %v33
    $region17: #{mps_forward.1} parent=1 // pred_fallthru
      _
    %v35 = vld [vmem:[#allocation2] sm:$0xff]
    %v36 = vld [vmem:[%s0] sm:$0x1]
    %vm37 = vcmp.eq.f32.partialorder %v36, -1.0
    %v38 = vsel %vm37, 0.01, 0.99
    %v39 = vlaneseq
    %v40 = vshrl.u32 %v39, 7
    %v41 = vsub.s32 0, %v40
    %v42 = vrot.slane %v38, %v41
    %v43 = vmul.f32 %v42, %v35
    %44 = vst [vmem:[#allocation3] sm:$0xff] %v43
    %v45 = vsub.f32 %v35, %v43
    %46 = vst [vmem:[#allocation3 + $0x8] sm:$0xff] %v45
    %v47 = vld [vmem:[#allocation4] sm:$0xff]
    %v48 = vld [vmem:[#allocation3] sm:$0xff]
    %v49 = vld [vmem:[#allocation3 + $0x8] sm:$0xff]
    %vm50 = vcmask 130048
    %v52 = vsel %vm50, %v47, 0
    %54 = vmatprep.subr.mxu0 0.0
    %55 = vmatpush1.msra.mxu0 %v48
    %56 = vmatprep.subr.mxu0 0.0
    %57 = vmatpush1.msra.mxu0 %v49
    %58 = vmatprep.subr.mxu0 0.0
    %59 = vmatpush1.msra.mxu0 0.0
    %60 = vmatprep.subr.mxu0 0.0
    %61 = vmatpush1.msra.mxu0 0.0
    %62 = vmatprep.subr.mxu0 0.0
    %63 = vmatpush1.msra.mxu0 0.0
    %64 = vmatprep.subr.mxu0 0.0
    %65 = vmatpush1.msra.mxu0 0.0
    %66 = vmatprep.subr.mxu0 0.0
    %67 = vmatpush1.msra.mxu0 0.0
    %68 = vmatprep.subr.mxu0 0.0
    %69 = vmatpush1.msra.mxu0 0.0
    %70 = vmatprep.subr.mxu0 0.0
    %71 = vmatpush1.msra.mxu0 0.0
    %72 = vmatprep.subr.mxu0 0.0
    %73 = vmatpush1.msra.mxu0 0.0
    %74 = vmatprep.subr.mxu0 0.0
    %75 = vmatpush1.msra.mxu0 0.0
    %76 = vmatprep.subr.mxu0 0.0
    %77 = vmatpush1.msra.mxu0 0.0
    %78 = vmatprep.subr.mxu0 0.0
    %79 = vmatpush1.msra.mxu0 0.0
    %80 = vmatprep.subr.mxu0 0.0
    %81 = vmatpush1.msra.mxu0 0.0
    %82 = vmatprep.subr.mxu0 0.0
    %83 = vmatpush1.msra.mxu0 0.0
    %84 = vmatprep.subr.mxu0 0.0
    %85 = vmatpush1.msra.mxu0 0.0
    %86 = vmatprep.subr.mxu0 0.0
    %87 = vmatpush1.msra.mxu0 0.0
    %88 = vmatprep.subr.mxu0 0.0
    %89 = vmatpush1.msra.mxu0 0.0
    %90 = vmatprep.subr.mxu0 0.0
    %91 = vmatpush1.msra.mxu0 0.0
    %92 = vmatprep.subr.mxu0 0.0
    %93 = vmatpush1.msra.mxu0 0.0
    %94 = vmatprep.subr.mxu0 0.0
    %95 = vmatpush1.msra.mxu0 0.0
    %96 = vmatprep.subr.mxu0 0.0
    %97 = vmatpush1.msra.mxu0 0.0
    %98 = vmatprep.subr.mxu0 0.0
    %99 = vmatpush1.msra.mxu0 0.0
    %100 = vmatprep.subr.mxu0 0.0
    %101 = vmatpush1.msra.mxu0 0.0
    %102 = vmatprep.subr.mxu0 0.0
    %103 = vmatpush1.msra.mxu0 0.0
    %104 = vmatprep.subr.mxu0 0.0
    %105 = vmatpush1.msra.mxu0 0.0
    %106 = vmatprep.subr.mxu0 0.0
    %107 = vmatpush1.msra.mxu0 0.0
    %108 = vmatprep.subr.mxu0 0.0
    %109 = vmatpush1.msra.mxu0 0.0
    %110 = vmatprep.subr.mxu0 0.0
    %111 = vmatpush1.msra.mxu0 0.0
    %112 = vmatprep.subr.mxu0 0.0
    %113 = vmatpush1.msra.mxu0 0.0
    %114 = vmatprep.subr.mxu0 0.0
    %115 = vmatpush1.msra.mxu0 0.0
    %116 = vmatprep.subr.mxu0 0.0
    %117 = vmatpush1.msra.mxu0 0.0
    %118 = vmatprep.mubr.f32.mxu0 0.0
    %119 = vmatmul.mubr.f32.gmra.mrb[0].mxu0 %v52
    %v120 = vpop.f32.mrb[0].mxu0
    %v121 = vadd.f32 0.0, %v120
    %v122 = vpop.f32.mrb[0].mxu0
    %123 = vdwg.mxu0
    %v124 = vld [vmem:[%s0 + $0x1] sm:$0x1]
    %vm125 = vcmp.eq.f32.partialorder %v124, -1.0
    %v126 = vsel %vm125, 0.01, 0.99
    %v127 = vlaneseq
    %v128 = vshrl.u32 %v127, 7
    %v129 = vsub.s32 0, %v128
    %v130 = vrot.slane %v126, %v129
    %v131 = vmul.f32 %v130, %v121
    %132 = vst [vmem:[#allocation3] sm:$0xff] %v131
    %v133 = vsub.f32 %v121, %v131
    %134 = vst [vmem:[#allocation3 + $0x8] sm:$0xff] %v133
    %s135 = scalar_lea.vmem [#allocation4], 8
    %v136 = vld [vmem:[%s135] sm:$0xff]
    %v137 = vld [vmem:[#allocation3] sm:$0xff]
    %v138 = vld [vmem:[#allocation3 + $0x8] sm:$0xff]
    %v140 = vsel %vm50, %v136, 0
    %142 = vmatprep.subr.mxu0 0.0
    %143 = vmatpush1.msra.mxu0 %v137
    %144 = vmatprep.subr.mxu0 0.0
    %145 = vmatpush1.msra.mxu0 %v138
    %146 = vmatprep.subr.mxu0 0.0
    %147 = vmatpush1.msra.mxu0 0.0
    %148 = vmatprep.subr.mxu0 0.0
    %149 = vmatpush1.msra.mxu0 0.0
    %150 = vmatprep.subr.mxu0 0.0
    %151 = vmatpush1.msra.mxu0 0.0
    %152 = vmatprep.subr.mxu0 0.0
    %153 = vmatpush1.msra.mxu0 0.0
    %154 = vmatprep.subr.mxu0 0.0
    %155 = vmatpush1.msra.mxu0 0.0
    %156 = vmatprep.subr.mxu0 0.0
    %157 = vmatpush1.msra.mxu0 0.0
    %158 = vmatprep.subr.mxu0 0.0
    %159 = vmatpush1.msra.mxu0 0.0
    %160 = vmatprep.subr.mxu0 0.0
    %161 = vmatpush1.msra.mxu0 0.0
    %162 = vmatprep.subr.mxu0 0.0
    %163 = vmatpush1.msra.mxu0 0.0
    %164 = vmatprep.subr.mxu0 0.0
    %165 = vmatpush1.msra.mxu0 0.0
    %166 = vmatprep.subr.mxu0 0.0
    %167 = vmatpush1.msra.mxu0 0.0
    %168 = vmatprep.subr.mxu0 0.0
    %169 = vmatpush1.msra.mxu0 0.0
    %170 = vmatprep.subr.mxu0 0.0
    %171 = vmatpush1.msra.mxu0 0.0
    %172 = vmatprep.subr.mxu0 0.0
    %173 = vmatpush1.msra.mxu0 0.0
    %174 = vmatprep.subr.mxu0 0.0
    %175 = vmatpush1.msra.mxu0 0.0
    %176 = vmatprep.subr.mxu0 0.0
    %177 = vmatpush1.msra.mxu0 0.0
    %178 = vmatprep.subr.mxu0 0.0
    %179 = vmatpush1.msra.mxu0 0.0
    %180 = vmatprep.subr.mxu0 0.0
    %181 = vmatpush1.msra.mxu0 0.0
    %182 = vmatprep.subr.mxu0 0.0
    %183 = vmatpush1.msra.mxu0 0.0
    %184 = vmatprep.subr.mxu0 0.0
    %185 = vmatpush1.msra.mxu0 0.0
    %186 = vmatprep.subr.mxu0 0.0
    %187 = vmatpush1.msra.mxu0 0.0
    %188 = vmatprep.subr.mxu0 0.0
    %189 = vmatpush1.msra.mxu0 0.0
    %190 = vmatprep.subr.mxu0 0.0
    %191 = vmatpush1.msra.mxu0 0.0
    %192 = vmatprep.subr.mxu0 0.0
    %193 = vmatpush1.msra.mxu0 0.0
    %194 = vmatprep.subr.mxu0 0.0
    %195 = vmatpush1.msra.mxu0 0.0
    %196 = vmatprep.subr.mxu0 0.0
    %197 = vmatpush1.msra.mxu0 0.0
    %198 = vmatprep.subr.mxu0 0.0
    %199 = vmatpush1.msra.mxu0 0.0
    %200 = vmatprep.subr.mxu0 0.0
    %201 = vmatpush1.msra.mxu0 0.0
    %202 = vmatprep.subr.mxu0 0.0
    %203 = vmatpush1.msra.mxu0 0.0
    %204 = vmatprep.subr.mxu0 0.0
    %205 = vmatpush1.msra.mxu0 0.0
    %206 = vmatprep.mubr.f32.mxu0 0.0
    %207 = vmatmul.mubr.f32.gmra.mrb[0].mxu0 %v140
    %v208 = vpop.f32.mrb[0].mxu0
    %v209 = vadd.f32 0.0, %v208
    %v210 = vpop.f32.mrb[0].mxu0
    %211 = vdwg.mxu0
    %v212 = vld [vmem:[%s0 + $0x2] sm:$0x1]
    %vm213 = vcmp.eq.f32.partialorder %v212, -1.0
    %v214 = vsel %vm213, 0.01, 0.99
    %v215 = vlaneseq
    %v216 = vshrl.u32 %v215, 7
    %v217 = vsub.s32 0, %v216
    %v218 = vrot.slane %v214, %v217
    %v219 = vmul.f32 %v218, %v209
    %220 = vst [vmem:[#allocation3] sm:$0xff] %v219
    %v221 = vsub.f32 %v209, %v219
    %222 = vst [vmem:[#allocation3 + $0x8] sm:$0xff] %v221
    %s223 = scalar_lea.vmem [#allocation4], 16
    %v224 = vld [vmem:[%s223] sm:$0xff]
    %v225 = vld [vmem:[#allocation3] sm:$0xff]
    %v226 = vld [vmem:[#allocation3 + $0x8] sm:$0xff]
    %v228 = vsel %vm50, %v224, 0
    %230 = vmatprep.subr.mxu0 0.0
    %231 = vmatpush1.msra.mxu0 %v225
    %232 = vmatprep.subr.mxu0 0.0
    %233 = vmatpush1.msra.mxu0 %v226
    %234 = vmatprep.subr.mxu0 0.0
    %235 = vmatpush1.msra.mxu0 0.0
    %236 = vmatprep.subr.mxu0 0.0
    %237 = vmatpush1.msra.mxu0 0.0
    %238 = vmatprep.subr.mxu0 0.0
    %239 = vmatpush1.msra.mxu0 0.0
    %240 = vmatprep.subr.mxu0 0.0
    %241 = vmatpush1.msra.mxu0 0.0
    %242 = vmatprep.subr.mxu0 0.0
    %243 = vmatpush1.msra.mxu0 0.0
    %244 = vmatprep.subr.mxu0 0.0
    %245 = vmatpush1.msra.mxu0 0.0
    %246 = vmatprep.subr.mxu0 0.0
    %247 = vmatpush1.msra.mxu0 0.0
    %248 = vmatprep.subr.mxu0 0.0
    %249 = vmatpush1.msra.mxu0 0.0
    %250 = vmatprep.subr.mxu0 0.0
    %251 = vmatpush1.msra.mxu0 0.0
    %252 = vmatprep.subr.mxu0 0.0
    %253 = vmatpush1.msra.mxu0 0.0
    %254 = vmatprep.subr.mxu0 0.0
    %255 = vmatpush1.msra.mxu0 0.0
    %256 = vmatprep.subr.mxu0 0.0
    %257 = vmatpush1.msra.mxu0 0.0
    %258 = vmatprep.subr.mxu0 0.0
    %259 = vmatpush1.msra.mxu0 0.0
    %260 = vmatprep.subr.mxu0 0.0
    %261 = vmatpush1.msra.mxu0 0.0
    %262 = vmatprep.subr.mxu0 0.0
    %263 = vmatpush1.msra.mxu0 0.0
    %264 = vmatprep.subr.mxu0 0.0
    %265 = vmatpush1.msra.mxu0 0.0
    %266 = vmatprep.subr.mxu0 0.0
    %267 = vmatpush1.msra.mxu0 0.0
    %268 = vmatprep.subr.mxu0 0.0
    %269 = vmatpush1.msra.mxu0 0.0
    %270 = vmatprep.subr.mxu0 0.0
    %271 = vmatpush1.msra.mxu0 0.0
    %272 = vmatprep.subr.mxu0 0.0
    %273 = vmatpush1.msra.mxu0 0.0
    %274 = vmatprep.subr.mxu0 0.0
    %275 = vmatpush1.msra.mxu0 0.0
    %276 = vmatprep.subr.mxu0 0.0
    %277 = vmatpush1.msra.mxu0 0.0
    %278 = vmatprep.subr.mxu0 0.0
    %279 = vmatpush1.msra.mxu0 0.0
    %280 = vmatprep.subr.mxu0 0.0
    %281 = vmatpush1.msra.mxu0 0.0
    %282 = vmatprep.subr.mxu0 0.0
    %283 = vmatpush1.msra.mxu0 0.0
    %284 = vmatprep.subr.mxu0 0.0
    %285 = vmatpush1.msra.mxu0 0.0
    %286 = vmatprep.subr.mxu0 0.0
    %287 = vmatpush1.msra.mxu0 0.0
    %288 = vmatprep.subr.mxu0 0.0
    %289 = vmatpush1.msra.mxu0 0.0
    %290 = vmatprep.subr.mxu0 0.0
    %291 = vmatpush1.msra.mxu0 0.0
    %292 = vmatprep.subr.mxu0 0.0
    %293 = vmatpush1.msra.mxu0 0.0
    %294 = vmatprep.mubr.f32.mxu0 0.0
    %295 = vmatmul.mubr.f32.gmra.mrb[0].mxu0 %v228
    %v296 = vpop.f32.mrb[0].mxu0
    %v297 = vadd.f32 0.0, %v296
    %v298 = vpop.f32.mrb[0].mxu0
    %299 = vdwg.mxu0
    %v300 = vld [vmem:[%s0 + $0x3] sm:$0x1]
    %vm301 = vcmp.eq.f32.partialorder %v300, -1.0
    %v302 = vsel %vm301, 0.01, 0.99
    %v303 = vlaneseq
    %v304 = vshrl.u32 %v303, 7
    %v305 = vsub.s32 0, %v304
    %v306 = vrot.slane %v302, %v305
    %v307 = vmul.f32 %v306, %v297
    %308 = vst [vmem:[#allocation3] sm:$0xff] %v307
    %v309 = vsub.f32 %v297, %v307
    %310 = vst [vmem:[#allocation3 + $0x8] sm:$0xff] %v309
    %s311 = scalar_lea.vmem [#allocation4], 24
    %v312 = vld [vmem:[%s311] sm:$0xff]
    %v313 = vld [vmem:[#allocation3] sm:$0xff]
    %v314 = vld [vmem:[#allocation3 + $0x8] sm:$0xff]
    %v316 = vsel %vm50, %v312, 0
    %318 = vmatprep.subr.mxu0 0.0
    %319 = vmatpush1.msra.mxu0 %v313
    %320 = vmatprep.subr.mxu0 0.0
    %321 = vmatpush1.msra.mxu0 %v314
    %322 = vmatprep.subr.mxu0 0.0
    %323 = vmatpush1.msra.mxu0 0.0
    %324 = vmatprep.subr.mxu0 0.0
    %325 = vmatpush1.msra.mxu0 0.0
    %326 = vmatprep.subr.mxu0 0.0
    %327 = vmatpush1.msra.mxu0 0.0
    %328 = vmatprep.subr.mxu0 0.0
    %329 = vmatpush1.msra.mxu0 0.0
    %330 = vmatprep.subr.mxu0 0.0
    %331 = vmatpush1.msra.mxu0 0.0
    %332 = vmatprep.subr.mxu0 0.0
    %333 = vmatpush1.msra.mxu0 0.0
    %334 = vmatprep.subr.mxu0 0.0
    %335 = vmatpush1.msra.mxu0 0.0
    %336 = vmatprep.subr.mxu0 0.0
    %337 = vmatpush1.msra.mxu0 0.0
    %338 = vmatprep.subr.mxu0 0.0
    %339 = vmatpush1.msra.mxu0 0.0
    %340 = vmatprep.subr.mxu0 0.0
    %341 = vmatpush1.msra.mxu0 0.0
    %342 = vmatprep.subr.mxu0 0.0
    %343 = vmatpush1.msra.mxu0 0.0
    %344 = vmatprep.subr.mxu0 0.0
    %345 = vmatpush1.msra.mxu0 0.0
    %346 = vmatprep.subr.mxu0 0.0
    %347 = vmatpush1.msra.mxu0 0.0
    %348 = vmatprep.subr.mxu0 0.0
    %349 = vmatpush1.msra.mxu0 0.0
    %350 = vmatprep.subr.mxu0 0.0
    %351 = vmatpush1.msra.mxu0 0.0
    %352 = vmatprep.subr.mxu0 0.0
    %353 = vmatpush1.msra.mxu0 0.0
    %354 = vmatprep.subr.mxu0 0.0
    %355 = vmatpush1.msra.mxu0 0.0
    %356 = vmatprep.subr.mxu0 0.0
    %357 = vmatpush1.msra.mxu0 0.0
    %358 = vmatprep.subr.mxu0 0.0
    %359 = vmatpush1.msra.mxu0 0.0
    %360 = vmatprep.subr.mxu0 0.0
    %361 = vmatpush1.msra.mxu0 0.0
    %362 = vmatprep.subr.mxu0 0.0
    %363 = vmatpush1.msra.mxu0 0.0
    %364 = vmatprep.subr.mxu0 0.0
    %365 = vmatpush1.msra.mxu0 0.0
    %366 = vmatprep.subr.mxu0 0.0
    %367 = vmatpush1.msra.mxu0 0.0
    %368 = vmatprep.subr.mxu0 0.0
    %369 = vmatpush1.msra.mxu0 0.0
    %370 = vmatprep.subr.mxu0 0.0
    %371 = vmatpush1.msra.mxu0 0.0
    %372 = vmatprep.subr.mxu0 0.0
    %373 = vmatpush1.msra.mxu0 0.0
    %374 = vmatprep.subr.mxu0 0.0
    %375 = vmatpush1.msra.mxu0 0.0
    %376 = vmatprep.subr.mxu0 0.0
    %377 = vmatpush1.msra.mxu0 0.0
    %378 = vmatprep.subr.mxu0 0.0
    %379 = vmatpush1.msra.mxu0 0.0
    %380 = vmatprep.subr.mxu0 0.0
    %381 = vmatpush1.msra.mxu0 0.0
    %382 = vmatprep.mubr.f32.mxu0 0.0
    %383 = vmatmul.mubr.f32.gmra.mrb[0].mxu0 %v316
    %v384 = vpop.f32.mrb[0].mxu0
    %v385 = vadd.f32 0.0, %v384
    %v386 = vpop.f32.mrb[0].mxu0
    %387 = vdwg.mxu0
    %v388 = vld [vmem:[%s0 + $0x4] sm:$0x1]
    %vm389 = vcmp.eq.f32.partialorder %v388, -1.0
    %v390 = vsel %vm389, 0.01, 0.99
    %v391 = vlaneseq
    %v392 = vshrl.u32 %v391, 7
    %v393 = vsub.s32 0, %v392
    %v394 = vrot.slane %v390, %v393
    %v395 = vmul.f32 %v394, %v385
    %396 = vst [vmem:[#allocation3] sm:$0xff] %v395
    %v397 = vsub.f32 %v385, %v395
    %398 = vst [vmem:[#allocation3 + $0x8] sm:$0xff] %v397
    %s399 = scalar_lea.vmem [#allocation4], 32
    %v400 = vld [vmem:[%s399] sm:$0xff]
    %v401 = vld [vmem:[#allocation3] sm:$0xff]
    %v402 = vld [vmem:[#allocation3 + $0x8] sm:$0xff]
    %v404 = vsel %vm50, %v400, 0
    %406 = vmatprep.subr.mxu0 0.0
    %407 = vmatpush1.msra.mxu0 %v401
    %408 = vmatprep.subr.mxu0 0.0
    %409 = vmatpush1.msra.mxu0 %v402
    %410 = vmatprep.subr.mxu0 0.0
    %411 = vmatpush1.msra.mxu0 0.0
    %412 = vmatprep.subr.mxu0 0.0
    %413 = vmatpush1.msra.mxu0 0.0
    %414 = vmatprep.subr.mxu0 0.0
    %415 = vmatpush1.msra.mxu0 0.0
    %416 = vmatprep.subr.mxu0 0.0
    %417 = vmatpush1.msra.mxu0 0.0
    %418 = vmatprep.subr.mxu0 0.0
    %419 = vmatpush1.msra.mxu0 0.0
    %420 = vmatprep.subr.mxu0 0.0
    %421 = vmatpush1.msra.mxu0 0.0
    %422 = vmatprep.subr.mxu0 0.0
    %423 = vmatpush1.msra.mxu0 0.0
    %424 = vmatprep.subr.mxu0 0.0
    %425 = vmatpush1.msra.mxu0 0.0
    %426 = vmatprep.subr.mxu0 0.0
    %427 = vmatpush1.msra.mxu0 0.0
    %428 = vmatprep.subr.mxu0 0.0
    %429 = vmatpush1.msra.mxu0 0.0
    %430 = vmatprep.subr.mxu0 0.0
    %431 = vmatpush1.msra.mxu0 0.0
    %432 = vmatprep.subr.mxu0 0.0
    %433 = vmatpush1.msra.mxu0 0.0
    %434 = vmatprep.subr.mxu0 0.0
    %435 = vmatpush1.msra.mxu0 0.0
    %436 = vmatprep.subr.mxu0 0.0
    %437 = vmatpush1.msra.mxu0 0.0
    %438 = vmatprep.subr.mxu0 0.0
    %439 = vmatpush1.msra.mxu0 0.0
    %440 = vmatprep.subr.mxu0 0.0
    %441 = vmatpush1.msra.mxu0 0.0
    %442 = vmatprep.subr.mxu0 0.0
    %443 = vmatpush1.msra.mxu0 0.0
    %444 = vmatprep.subr.mxu0 0.0
    %445 = vmatpush1.msra.mxu0 0.0
    %446 = vmatprep.subr.mxu0 0.0
    %447 = vmatpush1.msra.mxu0 0.0
    %448 = vmatprep.subr.mxu0 0.0
    %449 = vmatpush1.msra.mxu0 0.0
    %450 = vmatprep.subr.mxu0 0.0
    %451 = vmatpush1.msra.mxu0 0.0
    %452 = vmatprep.subr.mxu0 0.0
    %453 = vmatpush1.msra.mxu0 0.0
    %454 = vmatprep.subr.mxu0 0.0
    %455 = vmatpush1.msra.mxu0 0.0
    %456 = vmatprep.subr.mxu0 0.0
    %457 = vmatpush1.msra.mxu0 0.0
    %458 = vmatprep.subr.mxu0 0.0
    %459 = vmatpush1.msra.mxu0 0.0
    %460 = vmatprep.subr.mxu0 0.0
    %461 = vmatpush1.msra.mxu0 0.0
    %462 = vmatprep.subr.mxu0 0.0
    %463 = vmatpush1.msra.mxu0 0.0
    %464 = vmatprep.subr.mxu0 0.0
    %465 = vmatpush1.msra.mxu0 0.0
    %466 = vmatprep.subr.mxu0 0.0
    %467 = vmatpush1.msra.mxu0 0.0
    %468 = vmatprep.subr.mxu0 0.0
    %469 = vmatpush1.msra.mxu0 0.0
    %470 = vmatprep.mubr.f32.mxu0 0.0
    %471 = vmatmul.mubr.f32.gmra.mrb[0].mxu0 %v404
    %v472 = vpop.f32.mrb[0].mxu0
    %v473 = vadd.f32 0.0, %v472
    %v474 = vpop.f32.mrb[0].mxu0
    %475 = vdwg.mxu0
    %v476 = vld [vmem:[%s0 + $0x5] sm:$0x1]
    %vm477 = vcmp.eq.f32.partialorder %v476, -1.0
    %v478 = vsel %vm477, 0.01, 0.99
    %v479 = vlaneseq
    %v480 = vshrl.u32 %v479, 7
    %v481 = vsub.s32 0, %v480
    %v482 = vrot.slane %v478, %v481
    %v483 = vmul.f32 %v482, %v473
    %484 = vst [vmem:[#allocation3] sm:$0xff] %v483
    %v485 = vsub.f32 %v473, %v483
    %486 = vst [vmem:[#allocation3 + $0x8] sm:$0xff] %v485
    %s487 = scalar_lea.vmem [#allocation4], 40
    %v488 = vld [vmem:[%s487] sm:$0xff]
    %v489 = vld [vmem:[#allocation3] sm:$0xff]
    %v490 = vld [vmem:[#allocation3 + $0x8] sm:$0xff]
    %v492 = vsel %vm50, %v488, 0
    %494 = vmatprep.subr.mxu0 0.0
    %495 = vmatpush1.msra.mxu0 %v489
    %496 = vmatprep.subr.mxu0 0.0
    %497 = vmatpush1.msra.mxu0 %v490
    %498 = vmatprep.subr.mxu0 0.0
    %499 = vmatpush1.msra.mxu0 0.0
    %500 = vmatprep.subr.mxu0 0.0
    %501 = vmatpush1.msra.mxu0 0.0
    %502 = vmatprep.subr.mxu0 0.0
    %503 = vmatpush1.msra.mxu0 0.0
    %504 = vmatprep.subr.mxu0 0.0
    %505 = vmatpush1.msra.mxu0 0.0
    %506 = vmatprep.subr.mxu0 0.0
    %507 = vmatpush1.msra.mxu0 0.0
    %508 = vmatprep.subr.mxu0 0.0
    %509 = vmatpush1.msra.mxu0 0.0
    %510 = vmatprep.subr.mxu0 0.0
    %511 = vmatpush1.msra.mxu0 0.0
    %512 = vmatprep.subr.mxu0 0.0
    %513 = vmatpush1.msra.mxu0 0.0
    %514 = vmatprep.subr.mxu0 0.0
    %515 = vmatpush1.msra.mxu0 0.0
    %516 = vmatprep.subr.mxu0 0.0
    %517 = vmatpush1.msra.mxu0 0.0
    %518 = vmatprep.subr.mxu0 0.0
    %519 = vmatpush1.msra.mxu0 0.0
    %520 = vmatprep.subr.mxu0 0.0
    %521 = vmatpush1.msra.mxu0 0.0
    %522 = vmatprep.subr.mxu0 0.0
    %523 = vmatpush1.msra.mxu0 0.0
    %524 = vmatprep.subr.mxu0 0.0
    %525 = vmatpush1.msra.mxu0 0.0
    %526 = vmatprep.subr.mxu0 0.0
    %527 = vmatpush1.msra.mxu0 0.0
    %528 = vmatprep.subr.mxu0 0.0
    %529 = vmatpush1.msra.mxu0 0.0
    %530 = vmatprep.subr.mxu0 0.0
    %531 = vmatpush1.msra.mxu0 0.0
    %532 = vmatprep.subr.mxu0 0.0
    %533 = vmatpush1.msra.mxu0 0.0
    %534 = vmatprep.subr.mxu0 0.0
    %535 = vmatpush1.msra.mxu0 0.0
    %536 = vmatprep.subr.mxu0 0.0
    %537 = vmatpush1.msra.mxu0 0.0
    %538 = vmatprep.subr.mxu0 0.0
    %539 = vmatpush1.msra.mxu0 0.0
    %540 = vmatprep.subr.mxu0 0.0
    %541 = vmatpush1.msra.mxu0 0.0
    %542 = vmatprep.subr.mxu0 0.0
    %543 = vmatpush1.msra.mxu0 0.0
    %544 = vmatprep.subr.mxu0 0.0
    %545 = vmatpush1.msra.mxu0 0.0
    %546 = vmatprep.subr.mxu0 0.0
    %547 = vmatpush1.msra.mxu0 0.0
    %548 = vmatprep.subr.mxu0 0.0
    %549 = vmatpush1.msra.mxu0 0.0
    %550 = vmatprep.subr.mxu0 0.0
    %551 = vmatpush1.msra.mxu0 0.0
    %552 = vmatprep.subr.mxu0 0.0
    %553 = vmatpush1.msra.mxu0 0.0
    %554 = vmatprep.subr.mxu0 0.0
    %555 = vmatpush1.msra.mxu0 0.0
    %556 = vmatprep.subr.mxu0 0.0
    %557 = vmatpush1.msra.mxu0 0.0
    %558 = vmatprep.mubr.f32.mxu0 0.0
    %559 = vmatmul.mubr.f32.gmra.mrb[0].mxu0 %v492
    %v560 = vpop.f32.mrb[0].mxu0
    %v561 = vadd.f32 0.0, %v560
    %v562 = vpop.f32.mrb[0].mxu0
    %563 = vdwg.mxu0
    %v564 = vld [vmem:[%s0 + $0x6] sm:$0x1]
    %vm565 = vcmp.eq.f32.partialorder %v564, -1.0
    %v566 = vsel %vm565, 0.01, 0.99
    %v567 = vlaneseq
    %v568 = vshrl.u32 %v567, 7
    %v569 = vsub.s32 0, %v568
    %v570 = vrot.slane %v566, %v569
    %v571 = vmul.f32 %v570, %v561
    %572 = vst [vmem:[#allocation3] sm:$0xff] %v571
    %v573 = vsub.f32 %v561, %v571
    %574 = vst [vmem:[#allocation3 + $0x8] sm:$0xff] %v573
    %s575 = scalar_lea.vmem [#allocation4], 48
    %v576 = vld [vmem:[%s575] sm:$0xff]
    %v577 = vld [vmem:[#allocation3] sm:$0xff]
    %v578 = vld [vmem:[#allocation3 + $0x8] sm:$0xff]
    %v580 = vsel %vm50, %v576, 0
    %582 = vmatprep.subr.mxu0 0.0
    %583 = vmatpush1.msra.mxu0 %v577
    %584 = vmatprep.subr.mxu0 0.0
    %585 = vmatpush1.msra.mxu0 %v578
    %586 = vmatprep.subr.mxu0 0.0
    %587 = vmatpush1.msra.mxu0 0.0
    %588 = vmatprep.subr.mxu0 0.0
    %589 = vmatpush1.msra.mxu0 0.0
    %590 = vmatprep.subr.mxu0 0.0
    %591 = vmatpush1.msra.mxu0 0.0
    %592 = vmatprep.subr.mxu0 0.0
    %593 = vmatpush1.msra.mxu0 0.0
    %594 = vmatprep.subr.mxu0 0.0
    %595 = vmatpush1.msra.mxu0 0.0
    %596 = vmatprep.subr.mxu0 0.0
    %597 = vmatpush1.msra.mxu0 0.0
    %598 = vmatprep.subr.mxu0 0.0
    %599 = vmatpush1.msra.mxu0 0.0
    %600 = vmatprep.subr.mxu0 0.0
    %601 = vmatpush1.msra.mxu0 0.0
    %602 = vmatprep.subr.mxu0 0.0
    %603 = vmatpush1.msra.mxu0 0.0
    %604 = vmatprep.subr.mxu0 0.0
    %605 = vmatpush1.msra.mxu0 0.0
    %606 = vmatprep.subr.mxu0 0.0
    %607 = vmatpush1.msra.mxu0 0.0
    %608 = vmatprep.subr.mxu0 0.0
    %609 = vmatpush1.msra.mxu0 0.0
    %610 = vmatprep.subr.mxu0 0.0
    %611 = vmatpush1.msra.mxu0 0.0
    %612 = vmatprep.subr.mxu0 0.0
    %613 = vmatpush1.msra.mxu0 0.0
    %614 = vmatprep.subr.mxu0 0.0
    %615 = vmatpush1.msra.mxu0 0.0
    %616 = vmatprep.subr.mxu0 0.0
    %617 = vmatpush1.msra.mxu0 0.0
    %618 = vmatprep.subr.mxu0 0.0
    %619 = vmatpush1.msra.mxu0 0.0
    %620 = vmatprep.subr.mxu0 0.0
    %621 = vmatpush1.msra.mxu0 0.0
    %622 = vmatprep.subr.mxu0 0.0
    %623 = vmatpush1.msra.mxu0 0.0
    %624 = vmatprep.subr.mxu0 0.0
    %625 = vmatpush1.msra.mxu0 0.0
    %626 = vmatprep.subr.mxu0 0.0
    %627 = vmatpush1.msra.mxu0 0.0
    %628 = vmatprep.subr.mxu0 0.0
    %629 = vmatpush1.msra.mxu0 0.0
    %630 = vmatprep.subr.mxu0 0.0
    %631 = vmatpush1.msra.mxu0 0.0
    %632 = vmatprep.subr.mxu0 0.0
    %633 = vmatpush1.msra.mxu0 0.0
    %634 = vmatprep.subr.mxu0 0.0
    %635 = vmatpush1.msra.mxu0 0.0
    %636 = vmatprep.subr.mxu0 0.0
    %637 = vmatpush1.msra.mxu0 0.0
    %638 = vmatprep.subr.mxu0 0.0
    %639 = vmatpush1.msra.mxu0 0.0
    %640 = vmatprep.subr.mxu0 0.0
    %641 = vmatpush1.msra.mxu0 0.0
    %642 = vmatprep.subr.mxu0 0.0
    %643 = vmatpush1.msra.mxu0 0.0
    %644 = vmatprep.subr.mxu0 0.0
    %645 = vmatpush1.msra.mxu0 0.0
    %646 = vmatprep.mubr.f32.mxu0 0.0
    %647 = vmatmul.mubr.f32.gmra.mrb[0].mxu0 %v580
    %v648 = vpop.f32.mrb[0].mxu0
    %v649 = vadd.f32 0.0, %v648
    %v650 = vpop.f32.mrb[0].mxu0
    %651 = vdwg.mxu0
    %v652 = vld [vmem:[%s0 + $0x7] sm:$0x1]
    %vm653 = vcmp.eq.f32.partialorder %v652, -1.0
    %v654 = vsel %vm653, 0.01, 0.99
    %v655 = vlaneseq
    %v656 = vshrl.u32 %v655, 7
    %v657 = vsub.s32 0, %v656
    %v658 = vrot.slane %v654, %v657
    %v659 = vmul.f32 %v658, %v649
    %660 = vst [vmem:[#allocation3] sm:$0xff] %v659
    %v661 = vsub.f32 %v649, %v659
    %662 = vst [vmem:[#allocation3 + $0x8] sm:$0xff] %v661
    %s663 = scalar_lea.vmem [#allocation4], 56
    %v664 = vld [vmem:[%s663] sm:$0xff]
    %v665 = vld [vmem:[#allocation3] sm:$0xff]
    %v666 = vld [vmem:[#allocation3 + $0x8] sm:$0xff]
    %v668 = vsel %vm50, %v664, 0
    %670 = vmatprep.subr.mxu0 0.0
    %671 = vmatpush1.msra.mxu0 %v665
    %672 = vmatprep.subr.mxu0 0.0
    %673 = vmatpush1.msra.mxu0 %v666
    %674 = vmatprep.subr.mxu0 0.0
    %675 = vmatpush1.msra.mxu0 0.0
    %676 = vmatprep.subr.mxu0 0.0
    %677 = vmatpush1.msra.mxu0 0.0
    %678 = vmatprep.subr.mxu0 0.0
    %679 = vmatpush1.msra.mxu0 0.0
    %680 = vmatprep.subr.mxu0 0.0
    %681 = vmatpush1.msra.mxu0 0.0
    %682 = vmatprep.subr.mxu0 0.0
    %683 = vmatpush1.msra.mxu0 0.0
    %684 = vmatprep.subr.mxu0 0.0
    %685 = vmatpush1.msra.mxu0 0.0
    %686 = vmatprep.subr.mxu0 0.0
    %687 = vmatpush1.msra.mxu0 0.0
    %688 = vmatprep.subr.mxu0 0.0
    %689 = vmatpush1.msra.mxu0 0.0
    %690 = vmatprep.subr.mxu0 0.0
    %691 = vmatpush1.msra.mxu0 0.0
    %692 = vmatprep.subr.mxu0 0.0
    %693 = vmatpush1.msra.mxu0 0.0
    %694 = vmatprep.subr.mxu0 0.0
    %695 = vmatpush1.msra.mxu0 0.0
    %696 = vmatprep.subr.mxu0 0.0
    %697 = vmatpush1.msra.mxu0 0.0
    %698 = vmatprep.subr.mxu0 0.0
    %699 = vmatpush1.msra.mxu0 0.0
    %700 = vmatprep.subr.mxu0 0.0
    %701 = vmatpush1.msra.mxu0 0.0
    %702 = vmatprep.subr.mxu0 0.0
    %703 = vmatpush1.msra.mxu0 0.0
    %704 = vmatprep.subr.mxu0 0.0
    %705 = vmatpush1.msra.mxu0 0.0
    %706 = vmatprep.subr.mxu0 0.0
    %707 = vmatpush1.msra.mxu0 0.0
    %708 = vmatprep.subr.mxu0 0.0
    %709 = vmatpush1.msra.mxu0 0.0
    %710 = vmatprep.subr.mxu0 0.0
    %711 = vmatpush1.msra.mxu0 0.0
    %712 = vmatprep.subr.mxu0 0.0
    %713 = vmatpush1.msra.mxu0 0.0
    %714 = vmatprep.subr.mxu0 0.0
    %715 = vmatpush1.msra.mxu0 0.0
    %716 = vmatprep.subr.mxu0 0.0
    %717 = vmatpush1.msra.mxu0 0.0
    %718 = vmatprep.subr.mxu0 0.0
    %719 = vmatpush1.msra.mxu0 0.0
    %720 = vmatprep.subr.mxu0 0.0
    %721 = vmatpush1.msra.mxu0 0.0
    %722 = vmatprep.subr.mxu0 0.0
    %723 = vmatpush1.msra.mxu0 0.0
    %724 = vmatprep.subr.mxu0 0.0
    %725 = vmatpush1.msra.mxu0 0.0
    %726 = vmatprep.subr.mxu0 0.0
    %727 = vmatpush1.msra.mxu0 0.0
    %728 = vmatprep.subr.mxu0 0.0
    %729 = vmatpush1.msra.mxu0 0.0
    %730 = vmatprep.subr.mxu0 0.0
    %731 = vmatpush1.msra.mxu0 0.0
    %732 = vmatprep.subr.mxu0 0.0
    %733 = vmatpush1.msra.mxu0 0.0
    %734 = vmatprep.mubr.f32.mxu0 0.0
    %735 = vmatmul.mubr.f32.gmra.mrb[0].mxu0 %v668
    %v736 = vpop.f32.mrb[0].mxu0
    %v737 = vadd.f32 0.0, %v736
    %v738 = vpop.f32.mrb[0].mxu0
    %739 = vdwg.mxu0
    %740 = vst [vmem:[#allocation2] sm:$0xff] %v737
    // Predicated region
    $region18: #{mps_forward.1} parent=1 // pred_check
      %p741 = pneg %p25
    $region19: #{mps_forward.1} parent=1 // pred_check_branch
      %743 = sbr.rel (%p741) target = $region21
    $region20: #{mps_forward.1} parent=1 // pred_region
      %v744 = vld [vmem:[#allocation2] sm:$0xff]
      %745 = vst [vmem:[%s2] sm:$0xff] %v744
    $region21: #{mps_forward.1} parent=1 // pred_fallthru
      _
    // Predicated region
    $region22: #{mps_forward.1} parent=1 // pred_check
      _
    $region23: #{mps_forward.1} parent=1 // pred_check_branch
      %747 = sbr.rel (0) target = $region25
    $region24: #{mps_forward.1} parent=1 // pred_region
      _
    $region25: #{mps_forward.1} parent=1 // pred_fallthru
      _
    // Predicated region
    $region26: #{mps_forward.1} parent=1 // pred_check
      _
    $region27: #{mps_forward.1} parent=1 // pred_check_branch
      %749 = sbr.rel (0) target = $region29
    $region28: #{mps_forward.1} parent=1 // pred_region
      _
    $region29: #{mps_forward.1} parent=1 // pred_fallthru
      _
    %750 = vsyncpa [#allocation5], 1

</llo_original>
